<compile_context>
chip_gen: v7x
topology: tpu7x:2x2x1
jax: 0.10.0
libtpu: 0.0.40
codegen_flags: <defaults>
</compile_context>

<pallas_src>
import math

import jax
import jax.numpy as jnp
from jax.experimental import pallas as pl
from jax.experimental.pallas import tpu as pltpu

_LANE = 128
_SUBLANE = 8


def _ceil_to(x: int, m: int) -> int:
    return ((x + m - 1) // m) * m


def _make_curve_kernel(tb: int):
    def kernel(t_ref, start_ref, end_ref, out_ref):
        # t_ref:             SMEM (B_pad,) scalar-prefetched t values (f32)
        # start_ref/end_ref: VMEM (r_tile, 128) tiles of the flattened params
        # out_ref:           VMEM (tb, r_tile, 128) output tile for this block
        i = pl.program_id(1)          # batch-block index (grid = (R, B))
        s = start_ref[...]
        diff = end_ref[...] - s       # once per tile, reused for all tb scalars
        for k in range(tb):           # tb is a small compile-time constant
            t = t_ref[i * tb + k]     # cheap SMEM scalar read
            out_ref[k, :, :] = (s + t * diff).astype(out_ref.dtype)

    return kernel


def curve_forward(t_batch, start, end, *, tb: int = 8, max_r_tile: int = 512):
    """Pallas equivalent of Curve.forward: stack of points along the curve."""
    param_shape = start.shape
    dtype = start.dtype
    end = end.astype(dtype)

    p = int(math.prod(param_shape))
    b = int(t_batch.shape[0])

    # Pad the flattened parameter to a lane-dense, tileable [R_pad, 128] slab.
    p_pad = _ceil_to(p, _SUBLANE * _LANE)
    r = p_pad // _LANE                       # multiple of 8
    r_tile = min(r, max_r_tile)              # multiple of 8 (max_r_tile is)
    r_pad = _ceil_to(r, r_tile)

    # Pad the batch of t's to a multiple of tb.
    tb = max(1, min(tb, b))
    b_pad = _ceil_to(b, tb)

    start2d = jnp.pad(start.reshape(-1), (0, r_pad * _LANE - p)).reshape(r_pad, _LANE)
    end2d = jnp.pad(end.reshape(-1), (0, r_pad * _LANE - p)).reshape(r_pad, _LANE)
    t_pad = jnp.pad(t_batch.astype(jnp.float32), (0, b_pad - b))

    nr = r_pad // r_tile
    nb = b_pad // tb

    # VMEM budget (double-buffered by default):
    #   inputs: 2 arrays * 2 bufs * r_tile*128*dsize
    #   output: 2 bufs * tb * r_tile*128*dsize
    # ~5 MiB at f32 / r_tile=512 / tb=8 -> fits every generation's default limit.
    out = pl.pallas_call(
        _make_curve_kernel(tb),
        out_shape=jax.ShapeDtypeStruct((b_pad, r_pad, _LANE), dtype),
        grid_spec=pltpu.PrefetchScalarGridSpec(
            num_scalar_prefetch=1,                     # t_batch -> SMEM
            grid=(nr, nb),                             # R outer, batch inner
            in_specs=[
                pl.BlockSpec((r_tile, _LANE), lambda rr, ii, t: (rr, 0)),  # start
                pl.BlockSpec((r_tile, _LANE), lambda rr, ii, t: (rr, 0)),  # end
            ],
            out_specs=pl.BlockSpec(
                (tb, r_tile, _LANE), lambda rr, ii, t: (ii, rr, 0)
            ),
        ),
        compiler_params=pltpu.CompilerParams(
            dimension_semantics=("parallel", "parallel"),
        ),
    )(t_pad, start2d, end2d)

    # Strip batch / parameter padding and restore the original parameter shape.
    out = out[:b].reshape(b, r_pad * _LANE)[:, :p]
    return out.reshape((b,) + param_shape)


if __name__ == "__main__":
    key = jax.random.PRNGKey(0)
    k1, k2, k3 = jax.random.split(key, 3)

    # Parameter tensor of shape (4, 16, 16) = 1024 elems, batch of 8 t values.
    param_shape = (4, 16, 16)
    start = jax.random.normal(k1, param_shape, dtype=jnp.float32)
    end = jax.random.normal(k2, param_shape, dtype=jnp.float32)
    t_batch = jax.random.uniform(k3, (8,), dtype=jnp.float32)

    out = curve_forward(t_batch, start, end)
    out = jax.block_until_ready(out)

    # Reference = torch.stack of lerps. The kernel uses start + t*(end-start),
    # which differs from (1-t)*start + t*end only by f32 rounding (~1e-7).
    ref = jnp.stack([(1.0 - t) * start + t * end for t in t_batch])
    assert out.shape == (8,) + param_shape
    assert jnp.allclose(out, ref, atol=1e-5, rtol=1e-5)

    # Second check: non-tile-aligned parameter shape + ragged batch exercises
    # the padding / slicing path.
    k4, k5, k6 = jax.random.split(jax.random.PRNGKey(1), 3)
    pshape2 = (3, 5, 7)
    s2 = jax.random.normal(k4, pshape2, dtype=jnp.float32)
    e2 = jax.random.normal(k5, pshape2, dtype=jnp.float32)
    t2 = jax.random.uniform(k6, (3,), dtype=jnp.float32)
    out2 = jax.block_until_ready(curve_forward(t2, s2, e2))
    ref2 = jnp.stack([(1.0 - t) * s2 + t * e2 for t in t2])
    assert out2.shape == (3,) + pshape2
    assert jnp.allclose(out2, ref2, atol=1e-5, rtol=1e-5)

    print("KERNEL_OK")
</pallas_src>

<mosaic_0001>
module attributes {stable_mosaic.version = 11 : i64} {
  func.func @kernel(%arg0: i32, %arg1: i32, %arg2: memref<8xf32, #tpu.memory_space<smem>>, %arg3: memref<8x128xf32, #tpu.memory_space<vmem>>, %arg4: memref<8x128xf32, #tpu.memory_space<vmem>>, %arg5: memref<8x8x128xf32, #tpu.memory_space<vmem>>) attributes {dimension_semantics = [#tpu.dimension_semantics<parallel>, #tpu.dimension_semantics<parallel>], iteration_bounds = array<i64: 1, 1>, scalar_prefetch = 1 : i64, scratch_operands = 0 : i64, tpu.core_type = #tpu.core_type<tc>, window_params = [{transform_indices = @transform_0, window_bounds = array<i64: 8, 128>}, {transform_indices = @transform_1, window_bounds = array<i64: 8, 128>}, {transform_indices = @transform_2, window_bounds = array<i64: 8, 8, 128>}]} {
    %c0 = arith.constant 0 : index
    %c0_0 = arith.constant 0 : index
    %0 = vector.load %arg3[%c0, %c0_0] : memref<8x128xf32, #tpu.memory_space<vmem>>, vector<8x128xf32>
    %c0_1 = arith.constant 0 : index
    %c0_2 = arith.constant 0 : index
    %1 = vector.load %arg4[%c0_1, %c0_2] : memref<8x128xf32, #tpu.memory_space<vmem>>, vector<8x128xf32>
    %2 = arith.subf %1, %0 : vector<8x128xf32>
    %c8_i32 = arith.constant 8 : i32
    %3 = arith.muli %arg1, %c8_i32 : i32
    %c0_i32 = arith.constant 0 : i32
    %4 = arith.addi %3, %c0_i32 : i32
    %5 = arith.index_cast %4 : i32 to index
    %6 = memref.load %arg2[%5] : memref<8xf32, #tpu.memory_space<smem>>
    %7 = vector.broadcast %6 : f32 to vector<8x128xf32>
    %8 = arith.mulf %7, %2 : vector<8x128xf32>
    %9 = arith.addf %0, %8 : vector<8x128xf32>
    %c0_3 = arith.constant 0 : index
    %c0_4 = arith.constant 0 : index
    %c0_5 = arith.constant 0 : index
    %10 = vector.load %arg5[%c0_3, %c0_4, %c0_5] : memref<8x8x128xf32, #tpu.memory_space<vmem>>, vector<1x8x128xf32>
    %11 = vector.shape_cast %10 : vector<1x8x128xf32> to vector<8x128xf32>
    %12 = vector.shape_cast %9 : vector<8x128xf32> to vector<1x8x128xf32>
    tpu.vector_store %arg5[%c0_3, %c0_4, %c0_5], %12 {strides = array<i32>} : memref<8x8x128xf32, #tpu.memory_space<vmem>>, vector<1x8x128xf32>,
    %c8_i32_6 = arith.constant 8 : i32
    %13 = arith.muli %arg1, %c8_i32_6 : i32
    %c1_i32 = arith.constant 1 : i32
    %14 = arith.addi %13, %c1_i32 : i32
    %15 = arith.index_cast %14 : i32 to index
    %16 = memref.load %arg2[%15] : memref<8xf32, #tpu.memory_space<smem>>
    %17 = vector.broadcast %16 : f32 to vector<8x128xf32>
    %18 = arith.mulf %17, %2 : vector<8x128xf32>
    %19 = arith.addf %0, %18 : vector<8x128xf32>
    %c1 = arith.constant 1 : index
    %c0_7 = arith.constant 0 : index
    %c0_8 = arith.constant 0 : index
    %20 = vector.load %arg5[%c1, %c0_7, %c0_8] : memref<8x8x128xf32, #tpu.memory_space<vmem>>, vector<1x8x128xf32>
    %21 = vector.shape_cast %20 : vector<1x8x128xf32> to vector<8x128xf32>
    %22 = vector.shape_cast %19 : vector<8x128xf32> to vector<1x8x128xf32>
    tpu.vector_store %arg5[%c1, %c0_7, %c0_8], %22 {strides = array<i32>} : memref<8x8x128xf32, #tpu.memory_space<vmem>>, vector<1x8x128xf32>,
    %c8_i32_9 = arith.constant 8 : i32
    %23 = arith.muli %arg1, %c8_i32_9 : i32
    %c2_i32 = arith.constant 2 : i32
    %24 = arith.addi %23, %c2_i32 : i32
    %25 = arith.index_cast %24 : i32 to index
    %26 = memref.load %arg2[%25] : memref<8xf32, #tpu.memory_space<smem>>
    %27 = vector.broadcast %26 : f32 to vector<8x128xf32>
    %28 = arith.mulf %27, %2 : vector<8x128xf32>
    %29 = arith.addf %0, %28 : vector<8x128xf32>
    %c2 = arith.constant 2 : index
    %c0_10 = arith.constant 0 : index
    %c0_11 = arith.constant 0 : index
    %30 = vector.load %arg5[%c2, %c0_10, %c0_11] : memref<8x8x128xf32, #tpu.memory_space<vmem>>, vector<1x8x128xf32>
    %31 = vector.shape_cast %30 : vector<1x8x128xf32> to vector<8x128xf32>
    %32 = vector.shape_cast %29 : vector<8x128xf32> to vector<1x8x128xf32>
    tpu.vector_store %arg5[%c2, %c0_10, %c0_11], %32 {strides = array<i32>} : memref<8x8x128xf32, #tpu.memory_space<vmem>>, vector<1x8x128xf32>,
    %c8_i32_12 = arith.constant 8 : i32
    %33 = arith.muli %arg1, %c8_i32_12 : i32
    %c3_i32 = arith.constant 3 : i32
    %34 = arith.addi %33, %c3_i32 : i32
    %35 = arith.index_cast %34 : i32 to index
    %36 = memref.load %arg2[%35] : memref<8xf32, #tpu.memory_space<smem>>
    %37 = vector.broadcast %36 : f32 to vector<8x128xf32>
    %38 = arith.mulf %37, %2 : vector<8x128xf32>
    %39 = arith.addf %0, %38 : vector<8x128xf32>
    %c3 = arith.constant 3 : index
    %c0_13 = arith.constant 0 : index
    %c0_14 = arith.constant 0 : index
    %40 = vector.load %arg5[%c3, %c0_13, %c0_14] : memref<8x8x128xf32, #tpu.memory_space<vmem>>, vector<1x8x128xf32>
    %41 = vector.shape_cast %40 : vector<1x8x128xf32> to vector<8x128xf32>
    %42 = vector.shape_cast %39 : vector<8x128xf32> to vector<1x8x128xf32>
    tpu.vector_store %arg5[%c3, %c0_13, %c0_14], %42 {strides = array<i32>} : memref<8x8x128xf32, #tpu.memory_space<vmem>>, vector<1x8x128xf32>,
    %c8_i32_15 = arith.constant 8 : i32
    %43 = arith.muli %arg1, %c8_i32_15 : i32
    %c4_i32 = arith.constant 4 : i32
    %44 = arith.addi %43, %c4_i32 : i32
    %45 = arith.index_cast %44 : i32 to index
    %46 = memref.load %arg2[%45] : memref<8xf32, #tpu.memory_space<smem>>
    %47 = vector.broadcast %46 : f32 to vector<8x128xf32>
    %48 = arith.mulf %47, %2 : vector<8x128xf32>
    %49 = arith.addf %0, %48 : vector<8x128xf32>
    %c4 = arith.constant 4 : index
    %c0_16 = arith.constant 0 : index
    %c0_17 = arith.constant 0 : index
    %50 = vector.load %arg5[%c4, %c0_16, %c0_17] : memref<8x8x128xf32, #tpu.memory_space<vmem>>, vector<1x8x128xf32>
    %51 = vector.shape_cast %50 : vector<1x8x128xf32> to vector<8x128xf32>
    %52 = vector.shape_cast %49 : vector<8x128xf32> to vector<1x8x128xf32>
    tpu.vector_store %arg5[%c4, %c0_16, %c0_17], %52 {strides = array<i32>} : memref<8x8x128xf32, #tpu.memory_space<vmem>>, vector<1x8x128xf32>,
    %c8_i32_18 = arith.constant 8 : i32
    %53 = arith.muli %arg1, %c8_i32_18 : i32
    %c5_i32 = arith.constant 5 : i32
    %54 = arith.addi %53, %c5_i32 : i32
    %55 = arith.index_cast %54 : i32 to index
    %56 = memref.load %arg2[%55] : memref<8xf32, #tpu.memory_space<smem>>
    %57 = vector.broadcast %56 : f32 to vector<8x128xf32>
    %58 = arith.mulf %57, %2 : vector<8x128xf32>
    %59 = arith.addf %0, %58 : vector<8x128xf32>
    %c5 = arith.constant 5 : index
    %c0_19 = arith.constant 0 : index
    %c0_20 = arith.constant 0 : index
    %60 = vector.load %arg5[%c5, %c0_19, %c0_20] : memref<8x8x128xf32, #tpu.memory_space<vmem>>, vector<1x8x128xf32>
    %61 = vector.shape_cast %60 : vector<1x8x128xf32> to vector<8x128xf32>
    %62 = vector.shape_cast %59 : vector<8x128xf32> to vector<1x8x128xf32>
    tpu.vector_store %arg5[%c5, %c0_19, %c0_20], %62 {strides = array<i32>} : memref<8x8x128xf32, #tpu.memory_space<vmem>>, vector<1x8x128xf32>,
    %c8_i32_21 = arith.constant 8 : i32
    %63 = arith.muli %arg1, %c8_i32_21 : i32
    %c6_i32 = arith.constant 6 : i32
    %64 = arith.addi %63, %c6_i32 : i32
    %65 = arith.index_cast %64 : i32 to index
    %66 = memref.load %arg2[%65] : memref<8xf32, #tpu.memory_space<smem>>
    %67 = vector.broadcast %66 : f32 to vector<8x128xf32>
    %68 = arith.mulf %67, %2 : vector<8x128xf32>
    %69 = arith.addf %0, %68 : vector<8x128xf32>
    %c6 = arith.constant 6 : index
    %c0_22 = arith.constant 0 : index
    %c0_23 = arith.constant 0 : index
    %70 = vector.load %arg5[%c6, %c0_22, %c0_23] : memref<8x8x128xf32, #tpu.memory_space<vmem>>, vector<1x8x128xf32>
    %71 = vector.shape_cast %70 : vector<1x8x128xf32> to vector<8x128xf32>
    %72 = vector.shape_cast %69 : vector<8x128xf32> to vector<1x8x128xf32>
    tpu.vector_store %arg5[%c6, %c0_22, %c0_23], %72 {strides = array<i32>} : memref<8x8x128xf32, #tpu.memory_space<vmem>>, vector<1x8x128xf32>,
    %c8_i32_24 = arith.constant 8 : i32
    %73 = arith.muli %arg1, %c8_i32_24 : i32
    %c7_i32 = arith.constant 7 : i32
    %74 = arith.addi %73, %c7_i32 : i32
    %75 = arith.index_cast %74 : i32 to index
    %76 = memref.load %arg2[%75] : memref<8xf32, #tpu.memory_space<smem>>
    %77 = vector.broadcast %76 : f32 to vector<8x128xf32>
    %78 = arith.mulf %77, %2 : vector<8x128xf32>
    %79 = arith.addf %0, %78 : vector<8x128xf32>
    %c7 = arith.constant 7 : index
    %c0_25 = arith.constant 0 : index
    %c0_26 = arith.constant 0 : index
    %80 = vector.load %arg5[%c7, %c0_25, %c0_26] : memref<8x8x128xf32, #tpu.memory_space<vmem>>, vector<1x8x128xf32>
    %81 = vector.shape_cast %80 : vector<1x8x128xf32> to vector<8x128xf32>
    %82 = vector.shape_cast %79 : vector<8x128xf32> to vector<1x8x128xf32>
    tpu.vector_store %arg5[%c7, %c0_25, %c0_26], %82 {strides = array<i32>} : memref<8x8x128xf32, #tpu.memory_space<vmem>>, vector<1x8x128xf32>,
    return
  }
  func.func @transform_0(%arg0: i32, %arg1: i32, %arg2: memref<8xf32, #tpu.memory_space<smem>>) -> (i32, i32) {
    %c0_i32 = arith.constant 0 : i32
    %c0_i32_0 = arith.constant 0 : i32
    return %arg0, %c0_i32 : i32, i32
  }
  func.func @transform_1(%arg0: i32, %arg1: i32, %arg2: memref<8xf32, #tpu.memory_space<smem>>) -> (i32, i32) {
    %c0_i32 = arith.constant 0 : i32
    %c0_i32_0 = arith.constant 0 : i32
    return %arg0, %c0_i32 : i32, i32
  }
  func.func @transform_2(%arg0: i32, %arg1: i32, %arg2: memref<8xf32, #tpu.memory_space<smem>>) -> (i32, i32, i32) {
    %c0_i32 = arith.constant 0 : i32
    %c0_i32_0 = arith.constant 0 : i32
    return %arg1, %arg0, %c0_i32 : i32, i32, i32
  }
}

</mosaic_0001>

<llo_original>
// kernel: tpu_custom_call.1
$region0: #{tpu_custom_call.1}
  #allocation0 [shape = 'u32[]', space=smem, size = 0x4, offset = 0x4, fixed_abs, tag = 'smem constant byte address 0x4 - core index']
  #allocation1 [shape = 'u32[144,128]{1,0:T(1,128)}', space=vmem, size = 0x12000, scoped, tag = 'internal scratch']
  #allocation2 [shape = 's32[1]{0}', space=sflag, size = 0x4, scoped, tag = 'scoped memory for tpu_custom_call.1']
  #allocation3 [shape = 'u8[512]{0}', space=smem, size = 0x200, scoped, tag = 'prefetched SMEM operand 0']
  %s0 = inlined_call_operand.hbm [shape: f32[8], index: 0, kind: input, shape index: {}]
  %s1 = inlined_call_operand.hbm [shape: f32[8,128], index: 1, kind: input, shape index: {}]
  %s2 = inlined_call_operand.hbm [shape: f32[8,128], index: 2, kind: input, shape index: {}]
  %s3 = inlined_call_operand.hbm [shape: f32[8,8,128], index: 3, kind: output, shape index: {}]
  %s4 = sld [smem:[#allocation0]]
  $region26: #{tpu_custom_call.1} parent=0
    _
  %s6 = ssub.s32 1, %s4
  %s7 = scalar_select 0, %s6, %s4
  %9 = dma.hbm_to_smem %s0, 16, [#allocation3], [#allocation2]
  %10 = dma.done [#allocation2], 16
  %11 = sfence
  $region1: #{tpu_custom_call.1} parent=0
    #allocation4 [shape = 'u8[4096]{0}', space=vmem, size = 0x1000, scoped, tag = 'input window, operand 1, single buffered']
    #allocation5 [shape = 's32[1]{0}', space=sflag, size = 0x4, scoped, tag = 'scoped memory for tpu_custom_call.1']
    #allocation6 [shape = 's32[1]{0}', space=sflag, size = 0x4, scoped, tag = 'scoped memory for tpu_custom_call.1']
    #allocation7 [shape = 'u8[4096]{0}', space=vmem, size = 0x1000, scoped, tag = 'input window, operand 2, single buffered']
    #allocation8 [shape = 's32[1]{0}', space=sflag, size = 0x4, scoped, tag = 'scoped memory for tpu_custom_call.1']
    #allocation9 [shape = 'u8[32768]{0}', space=vmem, size = 0x8000, scoped, tag = 'output window, operand 0, single buffered']
    %12 = vsyncpa [#allocation5], 0
    %13 = vsyncpa [#allocation8], 0
    %14 = vsyncpa [#allocation6], 0
    // Predicated region
    $region2: #{tpu_custom_call.1} parent=1 // pred_check
      _
    $region3: #{tpu_custom_call.1} parent=1 // pred_check_branch
      %16 = sbr.rel (0) target = $region5
    $region4: #{tpu_custom_call.1} parent=1 // pred_region
      %s18 = ssub.s32 128, 128
      %19 = vsyncadd [#allocation5], %s18
      %s21 = sshll.u32 [#allocation4], 4
      %s22 = int_to_ptr.vmem [resolvable:$true] %s21
      %24 = dma.hbm_to_vmem [thread:$0]  %s1, 128, %s22, [#allocation5]
    $region5: #{tpu_custom_call.1} parent=1 // pred_fallthru
      _
    // Predicated region
    $region6: #{tpu_custom_call.1} parent=1 // pred_check
      _
    $region7: #{tpu_custom_call.1} parent=1 // pred_check_branch
      %26 = sbr.rel (0) target = $region9
    $region8: #{tpu_custom_call.1} parent=1 // pred_region
      %s28 = ssub.s32 128, 128
      %29 = vsyncadd [#allocation8], %s28
      %s31 = sshll.u32 [#allocation7], 4
      %s32 = int_to_ptr.vmem [resolvable:$true] %s31
      %34 = dma.hbm_to_vmem [thread:$0]  %s2, 128, %s32, [#allocation8]
    $region9: #{tpu_custom_call.1} parent=1 // pred_fallthru
      _
    // Predicated region
    $region10: #{tpu_custom_call.1} parent=1 // pred_check
      _
    $region11: #{tpu_custom_call.1} parent=1 // pred_check_branch
      %36 = sbr.rel (0) target = $region13
    $region12: #{tpu_custom_call.1} parent=1 // pred_region
      %37 = dma.done [#allocation5], 128
    $region13: #{tpu_custom_call.1} parent=1 // pred_fallthru
      _
    // Predicated region
    $region14: #{tpu_custom_call.1} parent=1 // pred_check
      _
    $region15: #{tpu_custom_call.1} parent=1 // pred_check_branch
      %39 = sbr.rel (0) target = $region17
    $region16: #{tpu_custom_call.1} parent=1 // pred_region
      %40 = dma.done [#allocation8], 128
    $region17: #{tpu_custom_call.1} parent=1 // pred_fallthru
      _
    %v41 = vld [vmem:[#allocation4] sm:$0xff]
    %v42 = vld [vmem:[#allocation7] sm:$0xff]
    %v43 = vsub.f32 %v42, %v41
    %s44 = smul.u32 0, 8
    %s45 = sld [smem:[#allocation3 + %s44]]
    %v46 = vstv %s45
    %v47 = vmul.f32 %v46, %v43
    %v48 = vadd.f32 %v41, %v47
    %49 = vst [vmem:[#allocation9] sm:$0xff] %v48
    %s50 = sadd.s32 %s44, 1
    %s51 = sld [smem:[#allocation3 + %s50]]
    %v52 = vstv %s51
    %v53 = vmul.f32 %v52, %v43
    %v54 = vadd.f32 %v41, %v53
    %s55 = scalar_lea.vmem [#allocation9], 8
    %56 = vst [vmem:[%s55] sm:$0xff] %v54
    %s57 = sadd.s32 %s44, 2
    %s58 = sld [smem:[#allocation3 + %s57]]
    %v59 = vstv %s58
    %v60 = vmul.f32 %v59, %v43
    %v61 = vadd.f32 %v41, %v60
    %s62 = scalar_lea.vmem [#allocation9], 16
    %63 = vst [vmem:[%s62] sm:$0xff] %v61
    %s64 = sadd.s32 %s44, 3
    %s65 = sld [smem:[#allocation3 + %s64]]
    %v66 = vstv %s65
    %v67 = vmul.f32 %v66, %v43
    %v68 = vadd.f32 %v41, %v67
    %s69 = scalar_lea.vmem [#allocation9], 24
    %70 = vst [vmem:[%s69] sm:$0xff] %v68
    %s71 = sadd.s32 %s44, 4
    %s72 = sld [smem:[#allocation3 + %s71]]
    %v73 = vstv %s72
    %v74 = vmul.f32 %v73, %v43
    %v75 = vadd.f32 %v41, %v74
    %s76 = scalar_lea.vmem [#allocation9], 32
    %77 = vst [vmem:[%s76] sm:$0xff] %v75
    %s78 = sadd.s32 %s44, 5
    %s79 = sld [smem:[#allocation3 + %s78]]
    %v80 = vstv %s79
    %v81 = vmul.f32 %v80, %v43
    %v82 = vadd.f32 %v41, %v81
    %s83 = scalar_lea.vmem [#allocation9], 40
    %84 = vst [vmem:[%s83] sm:$0xff] %v82
    %s85 = sadd.s32 %s44, 6
    %s86 = sld [smem:[#allocation3 + %s85]]
    %v87 = vstv %s86
    %v88 = vmul.f32 %v87, %v43
    %v89 = vadd.f32 %v41, %v88
    %s90 = scalar_lea.vmem [#allocation9], 48
    %91 = vst [vmem:[%s90] sm:$0xff] %v89
    %s92 = sadd.s32 %s44, 7
    %s93 = sld [smem:[#allocation3 + %s92]]
    %v94 = vstv %s93
    %v95 = vmul.f32 %v94, %v43
    %v96 = vadd.f32 %v41, %v95
    %s97 = scalar_lea.vmem [#allocation9], 56
    %98 = vst [vmem:[%s97] sm:$0xff] %v96
    // Predicated region
    $region18: #{tpu_custom_call.1} parent=1 // pred_check
      _
    $region19: #{tpu_custom_call.1} parent=1 // pred_check_branch
      %100 = sbr.rel (0) target = $region21
    $region20: #{tpu_custom_call.1} parent=1 // pred_region
      %s102 = ssub.s32 1024, 1024
      %103 = vsyncadd [#allocation6], %s102
      %s104 = sshll.u32 [#allocation9], 4
      %s105 = int_to_ptr.vmem [resolvable:$true] %s104
      %110 = dma.vmem_to_hbm [thread:$0]  %s105, 1024, %s3, [#allocation6], 128, 128, 8
    $region21: #{tpu_custom_call.1} parent=1 // pred_fallthru
      _
    // Predicated region
    $region22: #{tpu_custom_call.1} parent=1 // pred_check
      _
    $region23: #{tpu_custom_call.1} parent=1 // pred_check_branch
      %112 = sbr.rel (0) target = $region25
    $region24: #{tpu_custom_call.1} parent=1 // pred_region
      %113 = dma.done [#allocation6], 1024
    $region25: #{tpu_custom_call.1} parent=1 // pred_fallthru
      _
    %114 = vsyncpa [#allocation5], 1
    %115 = vsyncpa [#allocation8], 1
    %116 = vsyncpa [#allocation6], 1

</llo_original>
